<compile_context>
chip_gen: v6e
topology: v6e:2x2x1
jax: 0.10.0
libtpu: 0.0.40
codegen_flags: <defaults>
</compile_context>

<pallas_src>
import functools

import jax
import jax.numpy as jnp
from jax.experimental import pallas as pl
from jax.experimental.pallas import tpu as pltpu


def _prefix_kernel(emb_ref, w1_ref, b1_ref, w2_ref, b2_ref, out_ref):
    # hidden = tanh(emb @ W1 + b1)   (MXU matmul, f32 accumulate; tanh in f32 on EUP)
    h = jnp.tanh(
        jnp.dot(emb_ref[...], w1_ref[...], preferred_element_type=jnp.float32)
        + b1_ref[...]
    )
    # out = hidden @ W2 + b2         (dropout(p=0.0) == identity, skipped)
    out = (
        jnp.dot(h.astype(w2_ref.dtype), w2_ref[...],
                preferred_element_type=jnp.float32)
        + b2_ref[...]
    )
    out_ref[...] = out.astype(out_ref.dtype)


def _cost(M, E, H, itemsize):
    return pl.CostEstimate(
        flops=2 * M * E * H + 2 * M * H * E,
        transcendentals=M * H,  # tanh
        bytes_accessed=(M * E + E * H + H + H * E + E + M * E) * itemsize,
    )


@jax.jit
def prefix_net_forward(emb, w1_t, b1_r, w2_t, b2_r):
    """Single-instance forward (the module's exact forward).

    Parameters are stored PRE-TRANSPOSED (done once at init):
      emb  [L, E]
      w1_t [E, H]   (= mlp1.weight.T)
      b1_r [1, H]
      w2_t [H, E]   (= mlp2.weight.T)
      b2_r [1, E]

    No grid: every operand is a whole-array VMEM block, so there is no
    per-step pipeline prologue/epilogue for this launch-overhead-bound call.
    """
    L, E = emb.shape
    H = w1_t.shape[1]
    itemsize = jnp.dtype(emb.dtype).itemsize

    vmem = pl.BlockSpec(memory_space=pltpu.MemorySpace.VMEM)
    return pl.pallas_call(
        _prefix_kernel,
        out_shape=jax.ShapeDtypeStruct((L, E), emb.dtype),
        in_specs=[vmem, vmem, vmem, vmem, vmem],
        out_specs=vmem,
        cost_estimate=_cost(L, E, H, itemsize),
    )(emb, w1_t, b1_r, w2_t, b2_r)


def compute_prefix_once(params):
    """The forward depends only on parameters -> compute once per weight
    update (or once at model load) and reuse the cached [L, E] result instead
    of re-running per microbatch / decode step."""
    return prefix_net_forward(
        params["emb"], params["w1_t"], params["b1_r"],
        params["w2_t"], params["b2_r"],
    )


@functools.partial(jax.jit, static_argnames=("row_tile",))
def prefix_net_forward_stacked(emb_stacked, w1_t, b1_r, w2_t, b2_r,
                               *, row_tile=256):
    """Batched forward: many prefix rows [M, E] (M a multiple of 8) sharing
    the same MLP weights, in ONE pallas_call.

    Grid tiles the stacked row axis (row_tile rows per step, f32 sublane-
    aligned); the weights/biases use constant index_maps so they stay
    VMEM-resident across the whole grid.  The row axis is "parallel" so on
    v7x both TensorCores take half the grid when M is large enough.
    """
    M, E = emb_stacked.shape
    H = w1_t.shape[1]
    itemsize = jnp.dtype(emb_stacked.dtype).itemsize

    tm = min(row_tile, M)
    assert tm % 8 == 0 and M % tm == 0, "stacked rows must tile by multiples of 8"
    grid = (M // tm,)

    return pl.pallas_call(
        _prefix_kernel,
        out_shape=jax.ShapeDtypeStruct((M, E), emb_stacked.dtype),
        grid_spec=pltpu.PrefetchScalarGridSpec(
            num_scalar_prefetch=0,
            grid=grid,
            in_specs=[
                pl.BlockSpec((tm, E), lambda i: (i, 0)),   # stacked emb rows
                pl.BlockSpec((E, H), lambda i: (0, 0)),    # W1^T  (resident)
                pl.BlockSpec((1, H), lambda i: (0, 0)),    # b1    (resident)
                pl.BlockSpec((H, E), lambda i: (0, 0)),    # W2^T  (resident)
                pl.BlockSpec((1, E), lambda i: (0, 0)),    # b2    (resident)
            ],
            out_specs=pl.BlockSpec((tm, E), lambda i: (i, 0)),
        ),
        compiler_params=pltpu.CompilerParams(
            dimension_semantics=("parallel",)),
        cost_estimate=_cost(M, E, H, itemsize),
    )(emb_stacked, w1_t, b1_r, w2_t, b2_r)


def _xavier_uniform(key, shape, dtype=jnp.float32):
    fan_out, fan_in = shape[0], shape[1]
    bound = (6.0 / (fan_in + fan_out)) ** 0.5
    return jax.random.uniform(key, shape, dtype, minval=-bound, maxval=bound)


def _linear_bias(key, fan_in, out_features, dtype=jnp.float32):
    # PyTorch nn.Linear default bias init: U(-1/sqrt(fan_in), 1/sqrt(fan_in))
    bound = 1.0 / (fan_in ** 0.5)
    return jax.random.uniform(key, (out_features,), dtype, minval=-bound, maxval=bound)


def init_prefix_params(key, length, emb_size, hidden_size, dtype=jnp.float32):
    """Builds PrefixNet parameters and pre-transposes them ONCE (init time),
    so the forward path does no per-call transpose/reshape work."""
    k_emb, k_w1, k_b1, k_w2, k_b2 = jax.random.split(key, 5)

    emb = _xavier_uniform(k_emb, (length, emb_size), dtype)        # [L, E]
    w1 = _xavier_uniform(k_w1, (hidden_size, emb_size), dtype)     # [H, E] (PyTorch)
    b1 = _linear_bias(k_b1, emb_size, hidden_size, dtype)          # [H]
    w2 = _xavier_uniform(k_w2, (emb_size, hidden_size), dtype)     # [E, H] (PyTorch)
    b2 = _linear_bias(k_b2, hidden_size, emb_size, dtype)          # [E]

    params = dict(
        emb=emb,
        w1_t=jnp.transpose(w1),                 # [E, H]
        b1_r=b1.reshape(1, hidden_size),        # [1, H]
        w2_t=jnp.transpose(w2),                 # [H, E]
        b2_r=b2.reshape(1, emb_size),           # [1, E]
    )
    pytorch_layout = (emb, w1, b1, w2, b2)      # kept only for the reference check
    return params, pytorch_layout


if __name__ == "__main__":
    # Small shapes consistent with the module: length=8, emb_size=32, hidden_size=64.
    length, emb_size, hidden_size = 8, 32, 64

    key = jax.random.PRNGKey(0)
    params, (emb, w1, b1, w2, b2) = init_prefix_params(
        key, length, emb_size, hidden_size
    )

    # --- (1) Module-exact forward: computed ONCE (result is parameter-only;
    #         cache it across microbatches / decode steps).
    prefix_cached = compute_prefix_once(params)
    prefix_cached = jax.block_until_ready(prefix_cached)

    ref = jnp.tanh(emb @ w1.T + b1) @ w2.T + b2
    assert prefix_cached.shape == (length, emb_size)
    assert jnp.allclose(prefix_cached, ref, atol=1e-5, rtol=1e-5)

    # --- (2) Stacked/batched path: 16 prefix instances (128 rows) sharing the
    #         MLP weights in a single pallas_call — one launch, one MXU pass.
    n_stack = 16
    emb_stacked = jax.random.normal(
        jax.random.PRNGKey(1), (n_stack * length, emb_size), jnp.float32)
    out_stacked = prefix_net_forward_stacked(
        emb_stacked, params["w1_t"], params["b1_r"],
        params["w2_t"], params["b2_r"], row_tile=128)
    out_stacked = jax.block_until_ready(out_stacked)

    ref_stacked = jnp.tanh(emb_stacked @ w1.T + b1) @ w2.T + b2
    assert out_stacked.shape == (n_stack * length, emb_size)
    assert jnp.allclose(out_stacked, ref_stacked, atol=1e-5, rtol=1e-5)

    print("KERNEL_OK")
</pallas_src>

<mosaic_0001>
module attributes {stable_mosaic.version = 11 : i64} {
  func.func @_prefix_kernel(%arg0: memref<8x32xf32, #tpu.memory_space<vmem>>, %arg1: memref<32x64xf32, #tpu.memory_space<vmem>>, %arg2: memref<1x64xf32, #tpu.memory_space<vmem>>, %arg3: memref<64x32xf32, #tpu.memory_space<vmem>>, %arg4: memref<1x32xf32, #tpu.memory_space<vmem>>, %arg5: memref<8x32xf32, #tpu.memory_space<vmem>>) attributes {dimension_semantics = [], scalar_prefetch = 0 : i64, scratch_operands = 0 : i64, tpu.core_type = #tpu.core_type<tc>} {
    %c0 = arith.constant 0 : index
    %c0_0 = arith.constant 0 : index
    %0 = vector.load %arg0[%c0, %c0_0] : memref<8x32xf32, #tpu.memory_space<vmem>>, vector<8x32xf32>
    %c0_1 = arith.constant 0 : index
    %c0_2 = arith.constant 0 : index
    %1 = vector.load %arg1[%c0_1, %c0_2] : memref<32x64xf32, #tpu.memory_space<vmem>>, vector<32x64xf32>
    %cst = arith.constant dense<0.000000e+00> : vector<8x64xf32>
    %2 = tpu.matmul %0, %1, %cst {dimension_numbers = #tpu.dot_dimension_numbers<[1], [0], [0], [1], [0, 0, 1, 1], [], []>} : vector<8x32xf32>, vector<32x64xf32>, vector<8x64xf32> -> vector<8x64xf32>
    %c0_3 = arith.constant 0 : index
    %c0_4 = arith.constant 0 : index
    %3 = vector.load %arg2[%c0_3, %c0_4] : memref<1x64xf32, #tpu.memory_space<vmem>>, vector<1x64xf32>
    %4 = vector.broadcast %3 : vector<1x64xf32> to vector<8x64xf32>
    %5 = arith.addf %2, %4 : vector<8x64xf32>
    %6 = math.tanh %5 : vector<8x64xf32>
    %c0_5 = arith.constant 0 : index
    %c0_6 = arith.constant 0 : index
    %7 = vector.load %arg3[%c0_5, %c0_6] : memref<64x32xf32, #tpu.memory_space<vmem>>, vector<64x32xf32>
    %cst_7 = arith.constant dense<0.000000e+00> : vector<8x32xf32>
    %8 = tpu.matmul %6, %7, %cst_7 {dimension_numbers = #tpu.dot_dimension_numbers<[1], [0], [0], [1], [0, 0, 1, 1], [], []>} : vector<8x64xf32>, vector<64x32xf32>, vector<8x32xf32> -> vector<8x32xf32>
    %c0_8 = arith.constant 0 : index
    %c0_9 = arith.constant 0 : index
    %9 = vector.load %arg4[%c0_8, %c0_9] : memref<1x32xf32, #tpu.memory_space<vmem>>, vector<1x32xf32>
    %10 = vector.broadcast %9 : vector<1x32xf32> to vector<8x32xf32>
    %11 = arith.addf %8, %10 : vector<8x32xf32>
    %c0_10 = arith.constant 0 : index
    %c0_11 = arith.constant 0 : index
    %12 = vector.load %arg5[%c0_10, %c0_11] : memref<8x32xf32, #tpu.memory_space<vmem>>, vector<8x32xf32>
    tpu.vector_store %arg5[%c0_10, %c0_11], %11 {strides = array<i32>} : memref<8x32xf32, #tpu.memory_space<vmem>>, vector<8x32xf32>,
    return
  }
}

</mosaic_0001>

<llo_original>
// kernel: prefix_net_forward.1
$region0: #{prefix_net_forward.1}
  #allocation0 [shape = 'u32[]', space=smem, size = 0x4, offset = 0x4, fixed_abs, tag = 'smem constant byte address 0x4 - core index']
  #allocation1 [shape = 'u32[144,128]{1,0:T(1,128)}', space=vmem, size = 0x12000, scoped, tag = 'internal scratch']
  %s0 = inlined_call_operand.vmem [shape: f32[8,32], index: 0, kind: input, shape index: {}]
  %s1 = inlined_call_operand.vmem [shape: f32[32,64], index: 1, kind: input, shape index: {}]
  %s2 = inlined_call_operand.vmem [shape: f32[1,64], index: 2, kind: input, shape index: {}]
  %s3 = inlined_call_operand.vmem [shape: f32[64,32], index: 3, kind: input, shape index: {}]
  %s4 = inlined_call_operand.vmem [shape: f32[1,32], index: 4, kind: input, shape index: {}]
  %s5 = inlined_call_operand.hbm [shape: f32[8,32], index: 5, kind: output, shape index: {}]
  %s6 = sld [smem:[#allocation0]]
  $region30: #{prefix_net_forward.1} parent=0
    _
  %s8 = ssub.s32 1, %s6
  %s9 = scalar_select 0, %s8, %s6
  $region1: #{prefix_net_forward.1} parent=0
    #allocation2 [shape = 'u8[4096]{0}', space=vmem, size = 0x1000, scoped, tag = 'output window, operand 0, single buffered']
    #allocation3 [shape = 's32[1]{0}', space=sflag, size = 0x4, scoped, tag = 'scoped memory for prefix_net_forward.1']
    %10 = vsyncpa [#allocation3], 0
    // Predicated region
    $region2: #{prefix_net_forward.1} parent=1 // pred_check
      _
    $region3: #{prefix_net_forward.1} parent=1 // pred_check_branch
      %12 = sbr.rel (0) target = $region5
    $region4: #{prefix_net_forward.1} parent=1 // pred_region
      _
    $region5: #{prefix_net_forward.1} parent=1 // pred_fallthru
      _
    // Predicated region
    $region6: #{prefix_net_forward.1} parent=1 // pred_check
      _
    $region7: #{prefix_net_forward.1} parent=1 // pred_check_branch
      %14 = sbr.rel (0) target = $region9
    $region8: #{prefix_net_forward.1} parent=1 // pred_region
      _
    $region9: #{prefix_net_forward.1} parent=1 // pred_fallthru
      _
    // Predicated region
    $region10: #{prefix_net_forward.1} parent=1 // pred_check
      _
    $region11: #{prefix_net_forward.1} parent=1 // pred_check_branch
      %16 = sbr.rel (0) target = $region13
    $region12: #{prefix_net_forward.1} parent=1 // pred_region
      _
    $region13: #{prefix_net_forward.1} parent=1 // pred_fallthru
      _
    // Predicated region
    $region14: #{prefix_net_forward.1} parent=1 // pred_check
      _
    $region15: #{prefix_net_forward.1} parent=1 // pred_check_branch
      %18 = sbr.rel (0) target = $region17
    $region16: #{prefix_net_forward.1} parent=1 // pred_region
      _
    $region17: #{prefix_net_forward.1} parent=1 // pred_fallthru
      _
    // Predicated region
    $region18: #{prefix_net_forward.1} parent=1 // pred_check
      _
    $region19: #{prefix_net_forward.1} parent=1 // pred_check_branch
      %20 = sbr.rel (0) target = $region21
    $region20: #{prefix_net_forward.1} parent=1 // pred_region
      _
    $region21: #{prefix_net_forward.1} parent=1 // pred_fallthru
      _
    %v21 = vld [vmem:[%s0] sm:$0xff]
    %v22 = vld [vmem:[%s1] sm:$0xff]
    %v23 = vld [vmem:[%s1 + $0x8] sm:$0xff]
    %v24 = vld [vmem:[%s1 + $0x10] sm:$0xff]
    %v25 = vld [vmem:[%s1 + $0x18] sm:$0xff]
    %v26 = vld [vmem:[%s2] sm:$0x1]
    %v28 = vlaneseq
    %v29 = vshrl.u32 %v28, 7
    %v30 = vsub.s32 0, %v29
    %v31 = vrot.slane %v26, %v30
    %vm33 = vcmask 261120
    %v35 = vsel %vm33, %v21, 0
    %37 = vmatprep.subr.mxu0 0.0
    %38 = vmatpush1.msra.mxu0 0.0
    %39 = vmatprep.subr.mxu0 0.0
    %40 = vmatpush1.msra.mxu0 0.0
    %41 = vmatprep.subr.mxu0 0.0
    %42 = vmatpush1.msra.mxu0 0.0
    %43 = vmatprep.subr.mxu0 0.0
    %44 = vmatpush1.msra.mxu0 0.0
    %45 = vmatprep.subr.mxu0 0.0
    %46 = vmatpush1.msra.mxu0 0.0
    %47 = vmatprep.subr.mxu0 0.0
    %48 = vmatpush1.msra.mxu0 0.0
    %49 = vmatprep.subr.mxu0 0.0
    %50 = vmatpush1.msra.mxu0 0.0
    %51 = vmatprep.subr.mxu0 0.0
    %52 = vmatpush1.msra.mxu0 0.0
    %53 = vmatprep.subr.mxu0 0.0
    %54 = vmatpush1.msra.mxu0 0.0
    %55 = vmatprep.subr.mxu0 0.0
    %56 = vmatpush1.msra.mxu0 0.0
    %57 = vmatprep.subr.mxu0 0.0
    %58 = vmatpush1.msra.mxu0 0.0
    %59 = vmatprep.subr.mxu0 0.0
    %60 = vmatpush1.msra.mxu0 0.0
    %61 = vmatprep.subr.mxu0 0.0
    %62 = vmatpush1.msra.mxu0 %v25
    %63 = vmatprep.subr.mxu0 0.0
    %64 = vmatpush1.msra.mxu0 %v24
    %65 = vmatprep.subr.mxu0 0.0
    %66 = vmatpush1.msra.mxu0 %v23
    %67 = vmatprep.subr.mxu0 0.0
    %68 = vmatpush1.msra.mxu0 %v22
    %69 = vmatprep.subr.mxu0 0.0
    %70 = vmatpush2.msra.mxu0 0.0
    %71 = vmatprep.subr.mxu0 0.0
    %72 = vmatpush2.msra.mxu0 0.0
    %73 = vmatprep.subr.mxu0 0.0
    %74 = vmatpush2.msra.mxu0 0.0
    %75 = vmatprep.subr.mxu0 0.0
    %76 = vmatpush2.msra.mxu0 0.0
    %77 = vmatprep.subr.mxu0 0.0
    %78 = vmatpush2.msra.mxu0 0.0
    %79 = vmatprep.subr.mxu0 0.0
    %80 = vmatpush2.msra.mxu0 0.0
    %81 = vmatprep.subr.mxu0 0.0
    %82 = vmatpush2.msra.mxu0 0.0
    %83 = vmatprep.subr.mxu0 0.0
    %84 = vmatpush2.msra.mxu0 0.0
    %85 = vmatprep.subr.mxu0 0.0
    %86 = vmatpush2.msra.mxu0 0.0
    %87 = vmatprep.subr.mxu0 0.0
    %88 = vmatpush2.msra.mxu0 0.0
    %89 = vmatprep.subr.mxu0 0.0
    %90 = vmatpush2.msra.mxu0 0.0
    %91 = vmatprep.subr.mxu0 0.0
    %92 = vmatpush2.msra.mxu0 0.0
    %93 = vmatprep.subr.mxu0 0.0
    %94 = vmatpush2.msra.mxu0 0.0
    %95 = vmatprep.subr.mxu0 0.0
    %96 = vmatpush2.msra.mxu0 0.0
    %97 = vmatprep.subr.mxu0 0.0
    %98 = vmatpush2.msra.mxu0 0.0
    %99 = vmatprep.subr.mxu0 0.0
    %100 = vmatpush2.msra.mxu0 0.0
    %101 = vmatprep.mubr.f32.mxu0 0.0
    %102 = vmatmul.mubr.f32.gmra.mxu0 %v35
    %v103 = vpop.f32.mrf.mxu0
    %v104 = vadd.f32 %v31, %v103
    %v105 = vpop.f32.mrf.mxu0
    %106 = vdwg.mxu0
    %v107 = vtanh.pop %v104
    %v108 = vld [vmem:[%s3] sm:$0xff]
    %v109 = vld [vmem:[%s3 + $0x8] sm:$0xff]
    %v110 = vld [vmem:[%s3 + $0x10] sm:$0xff]
    %v111 = vld [vmem:[%s3 + $0x18] sm:$0xff]
    %v112 = vld [vmem:[%s3 + $0x20] sm:$0xff]
    %v113 = vld [vmem:[%s3 + $0x28] sm:$0xff]
    %v114 = vld [vmem:[%s3 + $0x30] sm:$0xff]
    %v115 = vld [vmem:[%s3 + $0x38] sm:$0xff]
    %v116 = vld [vmem:[%s4] sm:$0x1]
    %v118 = vlaneseq
    %v119 = vshrl.u32 %v118, 7
    %v120 = vsub.s32 0, %v119
    %v121 = vrot.slane %v116, %v120
    %vm123 = vcmask 523264
    %v125 = vsel %vm123, %v107, 0
    %127 = vmatprep.subr.mxu0 0.0
    %128 = vmatpush1.msra.mxu0 0.0
    %129 = vmatprep.subr.mxu0 0.0
    %130 = vmatpush1.msra.mxu0 0.0
    %131 = vmatprep.subr.mxu0 0.0
    %132 = vmatpush1.msra.mxu0 0.0
    %133 = vmatprep.subr.mxu0 0.0
    %134 = vmatpush1.msra.mxu0 0.0
    %135 = vmatprep.subr.mxu0 0.0
    %136 = vmatpush1.msra.mxu0 0.0
    %137 = vmatprep.subr.mxu0 0.0
    %138 = vmatpush1.msra.mxu0 0.0
    %139 = vmatprep.subr.mxu0 0.0
    %140 = vmatpush1.msra.mxu0 0.0
    %141 = vmatprep.subr.mxu0 0.0
    %142 = vmatpush1.msra.mxu0 0.0
    %143 = vmatprep.subr.mxu0 0.0
    %144 = vmatpush1.msra.mxu0 %v115
    %145 = vmatprep.subr.mxu0 0.0
    %146 = vmatpush1.msra.mxu0 %v114
    %147 = vmatprep.subr.mxu0 0.0
    %148 = vmatpush1.msra.mxu0 %v113
    %149 = vmatprep.subr.mxu0 0.0
    %150 = vmatpush1.msra.mxu0 %v112
    %151 = vmatprep.subr.mxu0 0.0
    %152 = vmatpush1.msra.mxu0 %v111
    %153 = vmatprep.subr.mxu0 0.0
    %154 = vmatpush1.msra.mxu0 %v110
    %155 = vmatprep.subr.mxu0 0.0
    %156 = vmatpush1.msra.mxu0 %v109
    %157 = vmatprep.subr.mxu0 0.0
    %158 = vmatpush1.msra.mxu0 %v108
    %159 = vmatprep.subr.mxu0 0.0
    %160 = vmatpush2.msra.mxu0 0.0
    %161 = vmatprep.subr.mxu0 0.0
    %162 = vmatpush2.msra.mxu0 0.0
    %163 = vmatprep.subr.mxu0 0.0
    %164 = vmatpush2.msra.mxu0 0.0
    %165 = vmatprep.subr.mxu0 0.0
    %166 = vmatpush2.msra.mxu0 0.0
    %167 = vmatprep.subr.mxu0 0.0
    %168 = vmatpush2.msra.mxu0 0.0
    %169 = vmatprep.subr.mxu0 0.0
    %170 = vmatpush2.msra.mxu0 0.0
    %171 = vmatprep.subr.mxu0 0.0
    %172 = vmatpush2.msra.mxu0 0.0
    %173 = vmatprep.subr.mxu0 0.0
    %174 = vmatpush2.msra.mxu0 0.0
    %175 = vmatprep.subr.mxu0 0.0
    %176 = vmatpush2.msra.mxu0 0.0
    %177 = vmatprep.subr.mxu0 0.0
    %178 = vmatpush2.msra.mxu0 0.0
    %179 = vmatprep.subr.mxu0 0.0
    %180 = vmatpush2.msra.mxu0 0.0
    %181 = vmatprep.subr.mxu0 0.0
    %182 = vmatpush2.msra.mxu0 0.0
    %183 = vmatprep.subr.mxu0 0.0
    %184 = vmatpush2.msra.mxu0 0.0
    %185 = vmatprep.subr.mxu0 0.0
    %186 = vmatpush2.msra.mxu0 0.0
    %187 = vmatprep.subr.mxu0 0.0
    %188 = vmatpush2.msra.mxu0 0.0
    %189 = vmatprep.subr.mxu0 0.0
    %190 = vmatpush2.msra.mxu0 0.0
    %191 = vmatprep.mubr.f32.mxu0 0.0
    %192 = vmatmul.mubr.f32.gmra.mxu0 %v125
    %v193 = vpop.f32.mrf.mxu0
    %v194 = vadd.f32 %v121, %v193
    %v195 = vpop.f32.mrf.mxu0
    %196 = vdwg.mxu0
    %197 = vst.msk [vmem:[#allocation2] sm:$0xff] %vm33, %v194
    // Predicated region
    $region22: #{prefix_net_forward.1} parent=1 // pred_check
      _
    $region23: #{prefix_net_forward.1} parent=1 // pred_check_branch
      %199 = sbr.rel (0) target = $region25
    $region24: #{prefix_net_forward.1} parent=1 // pred_region
      %s201 = ssub.s32 128, 128
      %202 = vsyncadd [#allocation3], %s201
      %s204 = sshll.u32 [#allocation2], 4
      %s205 = int_to_ptr.vmem [resolvable:$true] %s204
      %207 = dma.vmem_to_hbm [thread:$0]  %s205, 128, %s5, [#allocation3]
    $region25: #{prefix_net_forward.1} parent=1 // pred_fallthru
      _
    // Predicated region
    $region26: #{prefix_net_forward.1} parent=1 // pred_check
      _
    $region27: #{prefix_net_forward.1} parent=1 // pred_check_branch
      %209 = sbr.rel (0) target = $region29
    $region28: #{prefix_net_forward.1} parent=1 // pred_region
      %210 = dma.done [#allocation3], 128
    $region29: #{prefix_net_forward.1} parent=1 // pred_fallthru
      _
    %211 = vsyncpa [#allocation3], 1

</llo_original>
